<compile_context>
chip_gen: v6e
topology: v6e:2x2x1
jax: 0.10.0
libtpu: 0.0.40
codegen_flags: <defaults>
</compile_context>

<pallas_src>
import functools

import jax
import jax.numpy as jnp
from jax import lax
from jax.experimental import pallas as pl
from jax.experimental.pallas import tpu as pltpu

# Contract the last (K) dim of both operands: (tm, tk) x (tn, tk) -> (tm, tn).
_NT_DIMS = (((1,), (1,)), ((), ()))


def _round_up(x, m):
    return (x + m - 1) // m * m


def _linear_kernel_single(x_ref, w_ref, b_ref, o_ref):
    """grid = (B/tm, N/tn): whole K reduction in one MXU pass, no scratch."""
    acc = lax.dot_general(
        x_ref[...], w_ref[...], _NT_DIMS, preferred_element_type=jnp.float32
    )
    o_ref[...] = (acc + b_ref[...]).astype(o_ref.dtype)


def _linear_kernel_ksplit(x_ref, w_ref, b_ref, o_ref, acc_ref):
    """grid = (B/tm, N/tn, K/tk): accumulate partial products over K."""
    k = pl.program_id(2)

    @pl.when(k == 0)
    def _():
        acc_ref[...] = jnp.zeros_like(acc_ref)

    # += jnp.dot form lets Mosaic use in-place MXU accumulation (MRB on v7x)
    # with an f32 accumulator regardless of the streamed dtype.
    acc_ref[...] += lax.dot_general(
        x_ref[...], w_ref[...], _NT_DIMS, preferred_element_type=jnp.float32
    )

    @pl.when(k == pl.num_programs(2) - 1)
    def _():
        o_ref[...] = (acc_ref[...] + b_ref[...]).astype(o_ref.dtype)


def _pick_tiles(b8, k128, n128, in_itemsize, out_itemsize):
    """Largest (tm, tn, tk) that fit a conservative VMEM budget."""
    tm = min(256, b8)
    tn = min(512, n128)

    def est(tk):
        return (tm * tn * 4                     # f32 accumulator (scratch)
                + 2 * tm * tn * out_itemsize    # output double buffer
                + 2 * tm * tk * in_itemsize     # x double buffer
                + 2 * tn * tk * in_itemsize     # W double buffer
                + 2 * tn * 4)                   # bias double buffer

    budget = 20 * 1024 * 1024  # headroom under the 32 MiB scoped VMEM we request
    if est(k128) <= budget:
        tk = k128              # whole reduction in one pass -> no per-step overhead
    else:
        tk = 2048
        while tk > 128 and est(tk) > budget:
            tk //= 2
    return tm, tn, tk


def _pad_2d(a, shape, dtype):
    """Zero-pad `a` to `shape` / cast to `dtype`, avoiding copies when possible."""
    if a.shape == shape:
        return a.astype(dtype)  # no-op if dtype already matches
    return jnp.zeros(shape, dtype).at[: a.shape[0], : a.shape[1]].set(a.astype(dtype))


@functools.partial(jax.jit, static_argnames=("compute_dtype", "block_k"))
def linear_forward(x, weight, bias, *, compute_dtype=None, block_k=None):
    """y = flatten(x) @ weight.T + bias  (torch nn.Linear semantics).

    x       : (B, ...) — flattened to (B, K), matching x.view(x.size(0), -1)
    weight  : (N, K)   — torch (output_dim, input_dim) layout (NOT transposed)
    bias    : (N,)
    compute_dtype : optional dtype for the streamed operands (e.g. jnp.bfloat16).
                    Accumulation is always f32; output keeps x.dtype.
    block_k : optional override of the K tile (testing / tuning).
    """
    out_dtype = x.dtype
    if x.ndim > 2:
        x = x.reshape(x.shape[0], -1)
    B, K = x.shape
    N, Kw = weight.shape
    assert K == Kw, f"input_dim mismatch: {K} vs {Kw}"

    cdt = jnp.dtype(compute_dtype) if compute_dtype is not None else jnp.dtype(out_dtype)

    # Hardware-aligned padded extents.
    b8 = _round_up(B, 8)
    k128 = _round_up(K, 128)
    n128 = _round_up(N, 128)

    tm, tn, tk = _pick_tiles(b8, k128, n128, cdt.itemsize, jnp.dtype(out_dtype).itemsize)
    if block_k is not None:
        tk = block_k

    B_pad = _round_up(B, tm)
    K_pad = _round_up(K, tk)
    N_pad = _round_up(N, tn)

    # Zero-pad: padded K rows/cols contribute exactly zero; padded B/N sliced off.
    x_p = _pad_2d(x, (B_pad, K_pad), cdt)
    w_p = _pad_2d(weight, (N_pad, K_pad), cdt)
    if N_pad == N:
        b_p = bias.astype(jnp.float32).reshape(1, N_pad)
    else:
        b_p = jnp.zeros((1, N_pad), jnp.float32).at[0, :N].set(bias.astype(jnp.float32))

    k_steps = K_pad // tk

    if k_steps == 1:
        grid = (B_pad // tm, N_pad // tn)
        grid_spec = pltpu.PrefetchScalarGridSpec(
            num_scalar_prefetch=0,
            grid=grid,
            in_specs=[
                pl.BlockSpec((tm, tk), lambda i, j: (i, 0)),   # x tile
                pl.BlockSpec((tn, tk), lambda i, j: (j, 0)),   # W tile (torch layout)
                pl.BlockSpec((1, tn), lambda i, j: (0, j)),    # bias tile
            ],
            out_specs=pl.BlockSpec((tm, tn), lambda i, j: (i, j)),
        )
        kernel = _linear_kernel_single
        dim_sem = ("parallel", "parallel")
    else:
        grid = (B_pad // tm, N_pad // tn, k_steps)
        grid_spec = pltpu.PrefetchScalarGridSpec(
            num_scalar_prefetch=0,
            grid=grid,
            in_specs=[
                pl.BlockSpec((tm, tk), lambda i, j, k: (i, k)),   # x tile
                pl.BlockSpec((tn, tk), lambda i, j, k: (j, k)),   # W tile (torch layout)
                pl.BlockSpec((1, tn), lambda i, j, k: (0, j)),    # bias tile
            ],
            out_specs=pl.BlockSpec((tm, tn), lambda i, j, k: (i, j)),
            scratch_shapes=[pltpu.VMEM((tm, tn), jnp.float32)],
        )
        kernel = _linear_kernel_ksplit
        dim_sem = ("parallel", "parallel", "arbitrary")

    y_pad = pl.pallas_call(
        kernel,
        out_shape=jax.ShapeDtypeStruct((B_pad, N_pad), out_dtype),
        grid_spec=grid_spec,
        compiler_params=pltpu.CompilerParams(
            dimension_semantics=dim_sem,
            vmem_limit_bytes=32 * 1024 * 1024,
        ),
    )(x_p, w_p, b_p)

    if B_pad == B and N_pad == N:
        return y_pad
    return y_pad[:B, :N]


def init_linear_params(key, input_dim, output_dim, stddev=0.02):
    """Matches the torch module: weight ~ N(0, stddev), bias = 0."""
    w = stddev * jax.random.normal(key, (output_dim, input_dim), dtype=jnp.float32)
    b = jnp.zeros((output_dim,), dtype=jnp.float32)
    return w, b


if __name__ == "__main__":
    key = jax.random.PRNGKey(0)
    k_x, k_w, k_b = jax.random.split(key, 3)

    # Small NCHW-like input; torch Linear flattens it to (B, C*H*W).
    B, C, H, W = 2, 4, 16, 16
    input_dim = C * H * W   # 1024
    output_dim = 32

    x = jax.random.normal(k_x, (B, C, H, W), dtype=jnp.float32)
    weight, bias = init_linear_params(k_w, input_dim, output_dim, stddev=0.02)
    # Use a nonzero bias in the test so the bias-add path is actually verified.
    bias = bias + 0.5 * jax.random.normal(k_b, (output_dim,), dtype=jnp.float32)

    # Reference (same math as torch F.linear).
    y_ref = x.reshape(B, -1) @ weight.T + bias

    # f32 path, single-pass kernel (whole K reduction in one MXU pass).
    y = jax.block_until_ready(linear_forward(x, weight, bias))
    assert y.shape == (B, output_dim)
    assert jnp.allclose(y, y_ref, atol=1e-4, rtol=1e-4), "f32 single-pass mismatch"

    # f32 path, forced K-split accumulation (exercises the 3-D grid kernel).
    y_split = jax.block_until_ready(linear_forward(x, weight, bias, block_k=128))
    assert y_split.shape == (B, output_dim)
    assert jnp.allclose(y_split, y_ref, atol=1e-4, rtol=1e-4), "f32 k-split mismatch"

    # bf16-streamed operands (halved HBM traffic), f32 accumulation.
    y_bf16 = jax.block_until_ready(
        linear_forward(x, weight, bias, compute_dtype=jnp.bfloat16))
    assert y_bf16.shape == (B, output_dim)
    assert jnp.allclose(y_bf16, y_ref, atol=5e-2, rtol=5e-2), "bf16 mismatch"

    print("KERNEL_OK")
</pallas_src>

<mosaic_0001>
module attributes {stable_mosaic.version = 11 : i64} {
  func.func @_linear_kernel_single(%arg0: i32, %arg1: i32, %arg2: memref<8x1024xf32, #tpu.memory_space<vmem>>, %arg3: memref<128x1024xf32, #tpu.memory_space<vmem>>, %arg4: memref<1x128xf32, #tpu.memory_space<vmem>>, %arg5: memref<8x128xf32, #tpu.memory_space<vmem>>) attributes {dimension_semantics = [#tpu.dimension_semantics<parallel>, #tpu.dimension_semantics<parallel>], iteration_bounds = array<i64: 1, 1>, scalar_prefetch = 0 : i64, scratch_operands = 0 : i64, tpu.core_type = #tpu.core_type<tc>, window_params = [{transform_indices = @transform_0, window_bounds = array<i64: 8, 1024>}, {transform_indices = @transform_1, window_bounds = array<i64: 128, 1024>}, {transform_indices = @transform_2, window_bounds = array<i64: 1, 128>}, {transform_indices = @transform_3, window_bounds = array<i64: 8, 128>}]} {
    %c0 = arith.constant 0 : index
    %c0_0 = arith.constant 0 : index
    %0 = vector.load %arg2[%c0, %c0_0] : memref<8x1024xf32, #tpu.memory_space<vmem>>, vector<8x1024xf32>
    %c0_1 = arith.constant 0 : index
    %c0_2 = arith.constant 0 : index
    %1 = vector.load %arg3[%c0_1, %c0_2] : memref<128x1024xf32, #tpu.memory_space<vmem>>, vector<128x1024xf32>
    %cst = arith.constant dense<0.000000e+00> : vector<8x128xf32>
    %2 = tpu.matmul %0, %1, %cst {dimension_numbers = #tpu.dot_dimension_numbers<[1], [1], [0], [0], [0, 0, 1, 0], [], []>} : vector<8x1024xf32>, vector<128x1024xf32>, vector<8x128xf32> -> vector<8x128xf32>
    %c0_3 = arith.constant 0 : index
    %c0_4 = arith.constant 0 : index
    %3 = vector.load %arg4[%c0_3, %c0_4] : memref<1x128xf32, #tpu.memory_space<vmem>>, vector<1x128xf32>
    %4 = vector.broadcast %3 : vector<1x128xf32> to vector<8x128xf32>
    %5 = arith.addf %2, %4 : vector<8x128xf32>
    %c0_5 = arith.constant 0 : index
    %c0_6 = arith.constant 0 : index
    %6 = vector.load %arg5[%c0_5, %c0_6] : memref<8x128xf32, #tpu.memory_space<vmem>>, vector<8x128xf32>
    tpu.vector_store %arg5[%c0_5, %c0_6], %5 {strides = array<i32>} : memref<8x128xf32, #tpu.memory_space<vmem>>, vector<8x128xf32>,
    return
  }
  func.func @transform_0(%arg0: i32, %arg1: i32) -> (i32, i32) {
    %c0_i32 = arith.constant 0 : i32
    %c0_i32_0 = arith.constant 0 : i32
    return %arg0, %c0_i32 : i32, i32
  }
  func.func @transform_1(%arg0: i32, %arg1: i32) -> (i32, i32) {
    %c0_i32 = arith.constant 0 : i32
    %c0_i32_0 = arith.constant 0 : i32
    return %arg1, %c0_i32 : i32, i32
  }
  func.func @transform_2(%arg0: i32, %arg1: i32) -> (i32, i32) {
    %c0_i32 = arith.constant 0 : i32
    %c0_i32_0 = arith.constant 0 : i32
    return %c0_i32, %arg1 : i32, i32
  }
  func.func @transform_3(%arg0: i32, %arg1: i32) -> (i32, i32) {
    %c0_i32 = arith.constant 0 : i32
    return %arg0, %arg1 : i32, i32
  }
}

</mosaic_0001>

<llo_original>
// kernel: linear_forward.1
$region0: #{linear_forward.1}
  #allocation0 [shape = 'u32[]', space=smem, size = 0x4, offset = 0x4, fixed_abs, tag = 'smem constant byte address 0x4 - core index']
  #allocation1 [shape = 'u32[144,128]{1,0:T(1,128)}', space=vmem, size = 0x12000, scoped, tag = 'internal scratch']
  %s0 = inlined_call_operand.vmem [shape: f32[8,1024], index: 0, kind: input, shape index: {}]
  %s1 = inlined_call_operand.vmem [shape: f32[128,1024], index: 1, kind: input, shape index: {}]
  %s2 = inlined_call_operand.vmem [shape: f32[1,128], index: 2, kind: input, shape index: {}]
  %s3 = inlined_call_operand.vmem [shape: f32[8,128], index: 3, kind: output, shape index: {}]
  %s4 = sld [smem:[#allocation0]]
  $region22: #{linear_forward.1} parent=0
    _
  %s6 = ssub.s32 1, %s4
  %s7 = scalar_select 0, %s6, %s4
  // Predicated region
  $region2: #{linear_forward.1} parent=0 // pred_check
    _
  $region3: #{linear_forward.1} parent=0 // pred_check_branch
    %9 = sbr.rel (0) target = $region5
  $region4: #{linear_forward.1} parent=0 // pred_region
    _
  $region5: #{linear_forward.1} parent=0 // pred_fallthru
    _
  // Predicated region
  $region6: #{linear_forward.1} parent=0 // pred_check
    _
  $region7: #{linear_forward.1} parent=0 // pred_check_branch
    %11 = sbr.rel (0) target = $region9
  $region8: #{linear_forward.1} parent=0 // pred_region
    _
  $region9: #{linear_forward.1} parent=0 // pred_fallthru
    _
  // Predicated region
  $region10: #{linear_forward.1} parent=0 // pred_check
    _
  $region11: #{linear_forward.1} parent=0 // pred_check_branch
    %13 = sbr.rel (0) target = $region13
  $region12: #{linear_forward.1} parent=0 // pred_region
    _
  $region13: #{linear_forward.1} parent=0 // pred_fallthru
    _
  %v14 = vld [vmem:[%s0] sm:$0xff]
  %v15 = vld [vmem:[%s0 + $0x8] sm:$0xff]
  %v16 = vld [vmem:[%s0 + $0x10] sm:$0xff]
  %v17 = vld [vmem:[%s0 + $0x18] sm:$0xff]
  %v18 = vld [vmem:[%s0 + $0x20] sm:$0xff]
  %v19 = vld [vmem:[%s0 + $0x28] sm:$0xff]
  %v20 = vld [vmem:[%s0 + $0x30] sm:$0xff]
  %v21 = vld [vmem:[%s0 + $0x38] sm:$0xff]
  %v22 = vld [vmem:[%s1] sm:$0xff]
  %v23 = vld [vmem:[%s1 + $0x8] sm:$0xff]
  %v24 = vld [vmem:[%s1 + $0x10] sm:$0xff]
  %v25 = vld [vmem:[%s1 + $0x18] sm:$0xff]
  %v26 = vld [vmem:[%s1 + $0x20] sm:$0xff]
  %v27 = vld [vmem:[%s1 + $0x28] sm:$0xff]
  %v28 = vld [vmem:[%s1 + $0x30] sm:$0xff]
  %v29 = vld [vmem:[%s1 + $0x38] sm:$0xff]
  %v30 = vld [vmem:[%s1 + $0x40] sm:$0xff]
  %v31 = vld [vmem:[%s1 + $0x48] sm:$0xff]
  %v32 = vld [vmem:[%s1 + $0x50] sm:$0xff]
  %v33 = vld [vmem:[%s1 + $0x58] sm:$0xff]
  %v34 = vld [vmem:[%s1 + $0x60] sm:$0xff]
  %v35 = vld [vmem:[%s1 + $0x68] sm:$0xff]
  %v36 = vld [vmem:[%s1 + $0x70] sm:$0xff]
  %v37 = vld [vmem:[%s1 + $0x78] sm:$0xff]
  %v38 = vld [vmem:[%s1 + $0x80] sm:$0xff]
  %v39 = vld [vmem:[%s1 + $0x88] sm:$0xff]
  %v40 = vld [vmem:[%s1 + $0x90] sm:$0xff]
  %v41 = vld [vmem:[%s1 + $0x98] sm:$0xff]
  %v42 = vld [vmem:[%s1 + $0xa0] sm:$0xff]
  %v43 = vld [vmem:[%s1 + $0xa8] sm:$0xff]
  %v44 = vld [vmem:[%s1 + $0xb0] sm:$0xff]
  %v45 = vld [vmem:[%s1 + $0xb8] sm:$0xff]
  %v46 = vld [vmem:[%s1 + $0xc0] sm:$0xff]
  %v47 = vld [vmem:[%s1 + $0xc8] sm:$0xff]
  %v48 = vld [vmem:[%s1 + $0xd0] sm:$0xff]
  %v49 = vld [vmem:[%s1 + $0xd8] sm:$0xff]
  %v50 = vld [vmem:[%s1 + $0xe0] sm:$0xff]
  %v51 = vld [vmem:[%s1 + $0xe8] sm:$0xff]
  %v52 = vld [vmem:[%s1 + $0xf0] sm:$0xff]
  %v53 = vld [vmem:[%s1 + $0xf8] sm:$0xff]
  %v54 = vld [vmem:[%s1 + $0x100] sm:$0xff]
  %v55 = vld [vmem:[%s1 + $0x108] sm:$0xff]
  %v56 = vld [vmem:[%s1 + $0x110] sm:$0xff]
  %v57 = vld [vmem:[%s1 + $0x118] sm:$0xff]
  %v58 = vld [vmem:[%s1 + $0x120] sm:$0xff]
  %v59 = vld [vmem:[%s1 + $0x128] sm:$0xff]
  %v60 = vld [vmem:[%s1 + $0x130] sm:$0xff]
  %v61 = vld [vmem:[%s1 + $0x138] sm:$0xff]
  %v62 = vld [vmem:[%s1 + $0x140] sm:$0xff]
  %v63 = vld [vmem:[%s1 + $0x148] sm:$0xff]
  %v64 = vld [vmem:[%s1 + $0x150] sm:$0xff]
  %v65 = vld [vmem:[%s1 + $0x158] sm:$0xff]
  %v66 = vld [vmem:[%s1 + $0x160] sm:$0xff]
  %v67 = vld [vmem:[%s1 + $0x168] sm:$0xff]
  %v68 = vld [vmem:[%s1 + $0x170] sm:$0xff]
  %v69 = vld [vmem:[%s1 + $0x178] sm:$0xff]
  %v70 = vld [vmem:[%s1 + $0x180] sm:$0xff]
  %v71 = vld [vmem:[%s1 + $0x188] sm:$0xff]
  %v72 = vld [vmem:[%s1 + $0x190] sm:$0xff]
  %v73 = vld [vmem:[%s1 + $0x198] sm:$0xff]
  %v74 = vld [vmem:[%s1 + $0x1a0] sm:$0xff]
  %v75 = vld [vmem:[%s1 + $0x1a8] sm:$0xff]
  %v76 = vld [vmem:[%s1 + $0x1b0] sm:$0xff]
  %v77 = vld [vmem:[%s1 + $0x1b8] sm:$0xff]
  %v78 = vld [vmem:[%s1 + $0x1c0] sm:$0xff]
  %v79 = vld [vmem:[%s1 + $0x1c8] sm:$0xff]
  %v80 = vld [vmem:[%s1 + $0x1d0] sm:$0xff]
  %v81 = vld [vmem:[%s1 + $0x1d8] sm:$0xff]
  %v82 = vld [vmem:[%s1 + $0x1e0] sm:$0xff]
  %v83 = vld [vmem:[%s1 + $0x1e8] sm:$0xff]
  %v84 = vld [vmem:[%s1 + $0x1f0] sm:$0xff]
  %v85 = vld [vmem:[%s1 + $0x1f8] sm:$0xff]
  %v86 = vld [vmem:[%s1 + $0x200] sm:$0xff]
  %v87 = vld [vmem:[%s1 + $0x208] sm:$0xff]
  %v88 = vld [vmem:[%s1 + $0x210] sm:$0xff]
  %v89 = vld [vmem:[%s1 + $0x218] sm:$0xff]
  %v90 = vld [vmem:[%s1 + $0x220] sm:$0xff]
  %v91 = vld [vmem:[%s1 + $0x228] sm:$0xff]
  %v92 = vld [vmem:[%s1 + $0x230] sm:$0xff]
  %v93 = vld [vmem:[%s1 + $0x238] sm:$0xff]
  %v94 = vld [vmem:[%s1 + $0x240] sm:$0xff]
  %v95 = vld [vmem:[%s1 + $0x248] sm:$0xff]
  %v96 = vld [vmem:[%s1 + $0x250] sm:$0xff]
  %v97 = vld [vmem:[%s1 + $0x258] sm:$0xff]
  %v98 = vld [vmem:[%s1 + $0x260] sm:$0xff]
  %v99 = vld [vmem:[%s1 + $0x268] sm:$0xff]
  %v100 = vld [vmem:[%s1 + $0x270] sm:$0xff]
  %v101 = vld [vmem:[%s1 + $0x278] sm:$0xff]
  %v102 = vld [vmem:[%s1 + $0x280] sm:$0xff]
  %v103 = vld [vmem:[%s1 + $0x288] sm:$0xff]
  %v104 = vld [vmem:[%s1 + $0x290] sm:$0xff]
  %v105 = vld [vmem:[%s1 + $0x298] sm:$0xff]
  %v106 = vld [vmem:[%s1 + $0x2a0] sm:$0xff]
  %v107 = vld [vmem:[%s1 + $0x2a8] sm:$0xff]
  %v108 = vld [vmem:[%s1 + $0x2b0] sm:$0xff]
  %v109 = vld [vmem:[%s1 + $0x2b8] sm:$0xff]
  %v110 = vld [vmem:[%s1 + $0x2c0] sm:$0xff]
  %v111 = vld [vmem:[%s1 + $0x2c8] sm:$0xff]
  %v112 = vld [vmem:[%s1 + $0x2d0] sm:$0xff]
  %v113 = vld [vmem:[%s1 + $0x2d8] sm:$0xff]
  %v114 = vld [vmem:[%s1 + $0x2e0] sm:$0xff]
  %v115 = vld [vmem:[%s1 + $0x2e8] sm:$0xff]
  %v116 = vld [vmem:[%s1 + $0x2f0] sm:$0xff]
  %v117 = vld [vmem:[%s1 + $0x2f8] sm:$0xff]
  %v118 = vld [vmem:[%s1 + $0x300] sm:$0xff]
  %v119 = vld [vmem:[%s1 + $0x308] sm:$0xff]
  %v120 = vld [vmem:[%s1 + $0x310] sm:$0xff]
  %v121 = vld [vmem:[%s1 + $0x318] sm:$0xff]
  %v122 = vld [vmem:[%s1 + $0x320] sm:$0xff]
  %v123 = vld [vmem:[%s1 + $0x328] sm:$0xff]
  %v124 = vld [vmem:[%s1 + $0x330] sm:$0xff]
  %v125 = vld [vmem:[%s1 + $0x338] sm:$0xff]
  %v126 = vld [vmem:[%s1 + $0x340] sm:$0xff]
  %v127 = vld [vmem:[%s1 + $0x348] sm:$0xff]
  %v128 = vld [vmem:[%s1 + $0x350] sm:$0xff]
  %v129 = vld [vmem:[%s1 + $0x358] sm:$0xff]
  %v130 = vld [vmem:[%s1 + $0x360] sm:$0xff]
  %v131 = vld [vmem:[%s1 + $0x368] sm:$0xff]
  %v132 = vld [vmem:[%s1 + $0x370] sm:$0xff]
  %v133 = vld [vmem:[%s1 + $0x378] sm:$0xff]
  %v134 = vld [vmem:[%s1 + $0x380] sm:$0xff]
  %v135 = vld [vmem:[%s1 + $0x388] sm:$0xff]
  %v136 = vld [vmem:[%s1 + $0x390] sm:$0xff]
  %v137 = vld [vmem:[%s1 + $0x398] sm:$0xff]
  %v138 = vld [vmem:[%s1 + $0x3a0] sm:$0xff]
  %v139 = vld [vmem:[%s1 + $0x3a8] sm:$0xff]
  %v140 = vld [vmem:[%s1 + $0x3b0] sm:$0xff]
  %v141 = vld [vmem:[%s1 + $0x3b8] sm:$0xff]
  %v142 = vld [vmem:[%s1 + $0x3c0] sm:$0xff]
  %v143 = vld [vmem:[%s1 + $0x3c8] sm:$0xff]
  %v144 = vld [vmem:[%s1 + $0x3d0] sm:$0xff]
  %v145 = vld [vmem:[%s1 + $0x3d8] sm:$0xff]
  %v146 = vld [vmem:[%s1 + $0x3e0] sm:$0xff]
  %v147 = vld [vmem:[%s1 + $0x3e8] sm:$0xff]
  %v148 = vld [vmem:[%s1 + $0x3f0] sm:$0xff]
  %v149 = vld [vmem:[%s1 + $0x3f8] sm:$0xff]
  %v150 = vld [vmem:[%s2] sm:$0x1]
  %v152 = vlaneseq
  %v153 = vshrl.u32 %v152, 7
  %v154 = vsub.s32 0, %v153
  %v155 = vrot.slane %v150, %v154
  %157 = vmatprep.subr.mxu0 %v143
  %158 = vmatpush1.xpose.msra.mxu0 %v142
  %159 = vmatprep.subr.mxu0 %v135
  %160 = vmatpush1.xpose.msra.mxu0 %v134
  %161 = vmatprep.subr.mxu0 %v127
  %162 = vmatpush1.xpose.msra.mxu0 %v126
  %163 = vmatprep.subr.mxu0 %v119
  %164 = vmatpush1.xpose.msra.mxu0 %v118
  %165 = vmatprep.subr.mxu0 %v111
  %166 = vmatpush1.xpose.msra.mxu0 %v110
  %167 = vmatprep.subr.mxu0 %v103
  %168 = vmatpush1.xpose.msra.mxu0 %v102
  %169 = vmatprep.subr.mxu0 %v95
  %170 = vmatpush1.xpose.msra.mxu0 %v94
  %171 = vmatprep.subr.mxu0 %v87
  %172 = vmatpush1.xpose.msra.mxu0 %v86
  %173 = vmatprep.subr.mxu0 %v79
  %174 = vmatpush1.xpose.msra.mxu0 %v78
  %175 = vmatprep.subr.mxu0 %v71
  %176 = vmatpush1.xpose.msra.mxu0 %v70
  %177 = vmatprep.subr.mxu0 %v63
  %178 = vmatpush1.xpose.msra.mxu0 %v62
  %179 = vmatprep.subr.mxu0 %v55
  %180 = vmatpush1.xpose.msra.mxu0 %v54
  %181 = vmatprep.subr.mxu0 %v47
  %182 = vmatpush1.xpose.msra.mxu0 %v46
  %183 = vmatprep.subr.mxu0 %v39
  %184 = vmatpush1.xpose.msra.mxu0 %v38
  %185 = vmatprep.subr.mxu0 %v31
  %186 = vmatpush1.xpose.msra.mxu0 %v30
  %187 = vmatprep.subr.mxu0 %v23
  %188 = vmatpush1.xpose.msra.mxu0 %v22
  %189 = vmatprep.subr.mxu0 0.0
  %190 = vmatpush2.xpose.msra.mxu0 0.0
  %191 = vmatprep.subr.mxu0 0.0
  %192 = vmatpush2.xpose.msra.mxu0 0.0
  %193 = vmatprep.subr.mxu0 0.0
  %194 = vmatpush2.xpose.msra.mxu0 0.0
  %195 = vmatprep.subr.mxu0 0.0
  %196 = vmatpush2.xpose.msra.mxu0 0.0
  %197 = vmatprep.subr.mxu0 0.0
  %198 = vmatpush2.xpose.msra.mxu0 0.0
  %199 = vmatprep.subr.mxu0 0.0
  %200 = vmatpush2.xpose.msra.mxu0 0.0
  %201 = vmatprep.subr.mxu0 0.0
  %202 = vmatpush2.xpose.msra.mxu0 0.0
  %203 = vmatprep.subr.mxu0 0.0
  %204 = vmatpush2.xpose.msra.mxu0 0.0
  %205 = vmatprep.subr.mxu0 0.0
  %206 = vmatpush2.xpose.msra.mxu0 0.0
  %207 = vmatprep.subr.mxu0 0.0
  %208 = vmatpush2.xpose.msra.mxu0 0.0
  %209 = vmatprep.subr.mxu0 0.0
  %210 = vmatpush2.xpose.msra.mxu0 0.0
  %211 = vmatprep.subr.mxu0 0.0
  %212 = vmatpush2.xpose.msra.mxu0 0.0
  %213 = vmatprep.subr.mxu0 0.0
  %214 = vmatpush2.xpose.msra.mxu0 0.0
  %215 = vmatprep.subr.mxu0 0.0
  %216 = vmatpush2.xpose.msra.mxu0 0.0
  %217 = vmatprep.subr.mxu0 0.0
  %218 = vmatpush2.xpose.msra.mxu0 0.0
  %219 = vmatprep.subr.mxu0 0.0
  %220 = vmatpush2.xpose.msra.mxu0 0.0
  %221 = vmatprep.mubr.f32.mxu0 %v15
  %222 = vmatmul.mubr.f32.gmra.mxu0 %v14
  %v223 = vpop.f32.mrf.mxu0
  %v224 = vadd.f32 %v155, %v223
  %v225 = vpop.f32.mrf.mxu0
  %226 = vdwg.mxu0
  %227 = vmatprep.subr.mxu0 %v145
  %228 = vmatpush1.xpose.msra.mxu0 %v144
  %229 = vmatprep.subr.mxu0 %v137
  %230 = vmatpush1.xpose.msra.mxu0 %v136
  %231 = vmatprep.subr.mxu0 %v129
  %232 = vmatpush1.xpose.msra.mxu0 %v128
  %233 = vmatprep.subr.mxu0 %v121
  %234 = vmatpush1.xpose.msra.mxu0 %v120
  %235 = vmatprep.subr.mxu0 %v113
  %236 = vmatpush1.xpose.msra.mxu0 %v112
  %237 = vmatprep.subr.mxu0 %v105
  %238 = vmatpush1.xpose.msra.mxu0 %v104
  %239 = vmatprep.subr.mxu0 %v97
  %240 = vmatpush1.xpose.msra.mxu0 %v96
  %241 = vmatprep.subr.mxu0 %v89
  %242 = vmatpush1.xpose.msra.mxu0 %v88
  %243 = vmatprep.subr.mxu0 %v81
  %244 = vmatpush1.xpose.msra.mxu0 %v80
  %245 = vmatprep.subr.mxu0 %v73
  %246 = vmatpush1.xpose.msra.mxu0 %v72
  %247 = vmatprep.subr.mxu0 %v65
  %248 = vmatpush1.xpose.msra.mxu0 %v64
  %249 = vmatprep.subr.mxu0 %v57
  %250 = vmatpush1.xpose.msra.mxu0 %v56
  %251 = vmatprep.subr.mxu0 %v49
  %252 = vmatpush1.xpose.msra.mxu0 %v48
  %253 = vmatprep.subr.mxu0 %v41
  %254 = vmatpush1.xpose.msra.mxu0 %v40
  %255 = vmatprep.subr.mxu0 %v33
  %256 = vmatpush1.xpose.msra.mxu0 %v32
  %257 = vmatprep.subr.mxu0 %v25
  %258 = vmatpush1.xpose.msra.mxu0 %v24
  %259 = vmatprep.subr.mxu0 0.0
  %260 = vmatpush2.xpose.msra.mxu0 0.0
  %261 = vmatprep.subr.mxu0 0.0
  %262 = vmatpush2.xpose.msra.mxu0 0.0
  %263 = vmatprep.subr.mxu0 0.0
  %264 = vmatpush2.xpose.msra.mxu0 0.0
  %265 = vmatprep.subr.mxu0 0.0
  %266 = vmatpush2.xpose.msra.mxu0 0.0
  %267 = vmatprep.subr.mxu0 0.0
  %268 = vmatpush2.xpose.msra.mxu0 0.0
  %269 = vmatprep.subr.mxu0 0.0
  %270 = vmatpush2.xpose.msra.mxu0 0.0
  %271 = vmatprep.subr.mxu0 0.0
  %272 = vmatpush2.xpose.msra.mxu0 0.0
  %273 = vmatprep.subr.mxu0 0.0
  %274 = vmatpush2.xpose.msra.mxu0 0.0
  %275 = vmatprep.subr.mxu0 0.0
  %276 = vmatpush2.xpose.msra.mxu0 0.0
  %277 = vmatprep.subr.mxu0 0.0
  %278 = vmatpush2.xpose.msra.mxu0 0.0
  %279 = vmatprep.subr.mxu0 0.0
  %280 = vmatpush2.xpose.msra.mxu0 0.0
  %281 = vmatprep.subr.mxu0 0.0
  %282 = vmatpush2.xpose.msra.mxu0 0.0
  %283 = vmatprep.subr.mxu0 0.0
  %284 = vmatpush2.xpose.msra.mxu0 0.0
  %285 = vmatprep.subr.mxu0 0.0
  %286 = vmatpush2.xpose.msra.mxu0 0.0
  %287 = vmatprep.subr.mxu0 0.0
  %288 = vmatpush2.xpose.msra.mxu0 0.0
  %289 = vmatprep.subr.mxu0 0.0
  %290 = vmatpush2.xpose.msra.mxu0 0.0
  %291 = vmatprep.mubr.f32.mxu0 %v17
  %292 = vmatmul.mubr.f32.gmra.mxu0 %v16
  %v293 = vpop.f32.mrf.mxu0
  %v294 = vadd.f32 %v224, %v293
  %v295 = vpop.f32.mrf.mxu0
  %296 = vdwg.mxu0
  %297 = vmatprep.subr.mxu0 %v147
  %298 = vmatpush1.xpose.msra.mxu0 %v146
  %299 = vmatprep.subr.mxu0 %v139
  %300 = vmatpush1.xpose.msra.mxu0 %v138
  %301 = vmatprep.subr.mxu0 %v131
  %302 = vmatpush1.xpose.msra.mxu0 %v130
  %303 = vmatprep.subr.mxu0 %v123
  %304 = vmatpush1.xpose.msra.mxu0 %v122
  %305 = vmatprep.subr.mxu0 %v115
  %306 = vmatpush1.xpose.msra.mxu0 %v114
  %307 = vmatprep.subr.mxu0 %v107
  %308 = vmatpush1.xpose.msra.mxu0 %v106
  %309 = vmatprep.subr.mxu0 %v99
  %310 = vmatpush1.xpose.msra.mxu0 %v98
  %311 = vmatprep.subr.mxu0 %v91
  %312 = vmatpush1.xpose.msra.mxu0 %v90
  %313 = vmatprep.subr.mxu0 %v83
  %314 = vmatpush1.xpose.msra.mxu0 %v82
  %315 = vmatprep.subr.mxu0 %v75
  %316 = vmatpush1.xpose.msra.mxu0 %v74
  %317 = vmatprep.subr.mxu0 %v67
  %318 = vmatpush1.xpose.msra.mxu0 %v66
  %319 = vmatprep.subr.mxu0 %v59
  %320 = vmatpush1.xpose.msra.mxu0 %v58
  %321 = vmatprep.subr.mxu0 %v51
  %322 = vmatpush1.xpose.msra.mxu0 %v50
  %323 = vmatprep.subr.mxu0 %v43
  %324 = vmatpush1.xpose.msra.mxu0 %v42
  %325 = vmatprep.subr.mxu0 %v35
  %326 = vmatpush1.xpose.msra.mxu0 %v34
  %327 = vmatprep.subr.mxu0 %v27
  %328 = vmatpush1.xpose.msra.mxu0 %v26
  %329 = vmatprep.subr.mxu0 0.0
  %330 = vmatpush2.xpose.msra.mxu0 0.0
  %331 = vmatprep.subr.mxu0 0.0
  %332 = vmatpush2.xpose.msra.mxu0 0.0
  %333 = vmatprep.subr.mxu0 0.0
  %334 = vmatpush2.xpose.msra.mxu0 0.0
  %335 = vmatprep.subr.mxu0 0.0
  %336 = vmatpush2.xpose.msra.mxu0 0.0
  %337 = vmatprep.subr.mxu0 0.0
  %338 = vmatpush2.xpose.msra.mxu0 0.0
  %339 = vmatprep.subr.mxu0 0.0
  %340 = vmatpush2.xpose.msra.mxu0 0.0
  %341 = vmatprep.subr.mxu0 0.0
  %342 = vmatpush2.xpose.msra.mxu0 0.0
  %343 = vmatprep.subr.mxu0 0.0
  %344 = vmatpush2.xpose.msra.mxu0 0.0
  %345 = vmatprep.subr.mxu0 0.0
  %346 = vmatpush2.xpose.msra.mxu0 0.0
  %347 = vmatprep.subr.mxu0 0.0
  %348 = vmatpush2.xpose.msra.mxu0 0.0
  %349 = vmatprep.subr.mxu0 0.0
  %350 = vmatpush2.xpose.msra.mxu0 0.0
  %351 = vmatprep.subr.mxu0 0.0
  %352 = vmatpush2.xpose.msra.mxu0 0.0
  %353 = vmatprep.subr.mxu0 0.0
  %354 = vmatpush2.xpose.msra.mxu0 0.0
  %355 = vmatprep.subr.mxu0 0.0
  %356 = vmatpush2.xpose.msra.mxu0 0.0
  %357 = vmatprep.subr.mxu0 0.0
  %358 = vmatpush2.xpose.msra.mxu0 0.0
  %359 = vmatprep.subr.mxu0 0.0
  %360 = vmatpush2.xpose.msra.mxu0 0.0
  %361 = vmatprep.mubr.f32.mxu0 %v19
  %362 = vmatmul.mubr.f32.gmra.mxu0 %v18
  %v363 = vpop.f32.mrf.mxu0
  %v364 = vadd.f32 %v294, %v363
  %v365 = vpop.f32.mrf.mxu0
  %366 = vdwg.mxu0
  %367 = vmatprep.subr.mxu0 %v149
  %368 = vmatpush1.xpose.msra.mxu0 %v148
  %369 = vmatprep.subr.mxu0 %v141
  %370 = vmatpush1.xpose.msra.mxu0 %v140
  %371 = vmatprep.subr.mxu0 %v133
  %372 = vmatpush1.xpose.msra.mxu0 %v132
  %373 = vmatprep.subr.mxu0 %v125
  %374 = vmatpush1.xpose.msra.mxu0 %v124
  %375 = vmatprep.subr.mxu0 %v117
  %376 = vmatpush1.xpose.msra.mxu0 %v116
  %377 = vmatprep.subr.mxu0 %v109
  %378 = vmatpush1.xpose.msra.mxu0 %v108
  %379 = vmatprep.subr.mxu0 %v101
  %380 = vmatpush1.xpose.msra.mxu0 %v100
  %381 = vmatprep.subr.mxu0 %v93
  %382 = vmatpush1.xpose.msra.mxu0 %v92
  %383 = vmatprep.subr.mxu0 %v85
  %384 = vmatpush1.xpose.msra.mxu0 %v84
  %385 = vmatprep.subr.mxu0 %v77
  %386 = vmatpush1.xpose.msra.mxu0 %v76
  %387 = vmatprep.subr.mxu0 %v69
  %388 = vmatpush1.xpose.msra.mxu0 %v68
  %389 = vmatprep.subr.mxu0 %v61
  %390 = vmatpush1.xpose.msra.mxu0 %v60
  %391 = vmatprep.subr.mxu0 %v53
  %392 = vmatpush1.xpose.msra.mxu0 %v52
  %393 = vmatprep.subr.mxu0 %v45
  %394 = vmatpush1.xpose.msra.mxu0 %v44
  %395 = vmatprep.subr.mxu0 %v37
  %396 = vmatpush1.xpose.msra.mxu0 %v36
  %397 = vmatprep.subr.mxu0 %v29
  %398 = vmatpush1.xpose.msra.mxu0 %v28
  %399 = vmatprep.subr.mxu0 0.0
  %400 = vmatpush2.xpose.msra.mxu0 0.0
  %401 = vmatprep.subr.mxu0 0.0
  %402 = vmatpush2.xpose.msra.mxu0 0.0
  %403 = vmatprep.subr.mxu0 0.0
  %404 = vmatpush2.xpose.msra.mxu0 0.0
  %405 = vmatprep.subr.mxu0 0.0
  %406 = vmatpush2.xpose.msra.mxu0 0.0
  %407 = vmatprep.subr.mxu0 0.0
  %408 = vmatpush2.xpose.msra.mxu0 0.0
  %409 = vmatprep.subr.mxu0 0.0
  %410 = vmatpush2.xpose.msra.mxu0 0.0
  %411 = vmatprep.subr.mxu0 0.0
  %412 = vmatpush2.xpose.msra.mxu0 0.0
  %413 = vmatprep.subr.mxu0 0.0
  %414 = vmatpush2.xpose.msra.mxu0 0.0
  %415 = vmatprep.subr.mxu0 0.0
  %416 = vmatpush2.xpose.msra.mxu0 0.0
  %417 = vmatprep.subr.mxu0 0.0
  %418 = vmatpush2.xpose.msra.mxu0 0.0
  %419 = vmatprep.subr.mxu0 0.0
  %420 = vmatpush2.xpose.msra.mxu0 0.0
  %421 = vmatprep.subr.mxu0 0.0
  %422 = vmatpush2.xpose.msra.mxu0 0.0
  %423 = vmatprep.subr.mxu0 0.0
  %424 = vmatpush2.xpose.msra.mxu0 0.0
  %425 = vmatprep.subr.mxu0 0.0
  %426 = vmatpush2.xpose.msra.mxu0 0.0
  %427 = vmatprep.subr.mxu0 0.0
  %428 = vmatpush2.xpose.msra.mxu0 0.0
  %429 = vmatprep.subr.mxu0 0.0
  %430 = vmatpush2.xpose.msra.mxu0 0.0
  %431 = vmatprep.mubr.f32.mxu0 %v21
  %432 = vmatmul.mubr.f32.gmra.mxu0 %v20
  %v433 = vpop.f32.mrf.mxu0
  %v434 = vadd.f32 %v364, %v433
  %v435 = vpop.f32.mrf.mxu0
  %436 = vdwg.mxu0
  %437 = vst [vmem:[%s3] sm:$0xff] %v434
  // Predicated region
  $region14: #{linear_forward.1} parent=0 // pred_check
    _
  $region15: #{linear_forward.1} parent=0 // pred_check_branch
    %439 = sbr.rel (0) target = $region17
  $region16: #{linear_forward.1} parent=0 // pred_region
    _
  $region17: #{linear_forward.1} parent=0 // pred_fallthru
    _
  // Predicated region
  $region18: #{linear_forward.1} parent=0 // pred_check
    _
  $region19: #{linear_forward.1} parent=0 // pred_check_branch
    %441 = sbr.rel (0) target = $region21
  $region20: #{linear_forward.1} parent=0 // pred_region
    _
  $region21: #{linear_forward.1} parent=0 // pred_fallthru
    _

</llo_original>
